<compile_context>
chip_gen: v7x
topology: tpu7x:2x2x1
jax: 0.10.0
libtpu: 0.0.40
codegen_flags: <defaults>
</compile_context>

<pallas_src>
import jax
import jax.numpy as jnp
from jax import lax
from jax.experimental import pallas as pl
from jax.experimental.pallas import tpu as pltpu

_EPS = 1e-12  # F.normalize default eps


def _make_kernel(T, ref_idx):
    """Build the kernel for T frames with a static reference-frame index."""

    def kernel(*refs):
        frame_refs = refs[:T]   # T refs, each [C, S_TILE] (batch dim squeezed)
        o_ref = refs[T]         # [C, S_TILE]

        cur = frame_refs[ref_idx][...].astype(jnp.float32)        # [C, St]
        cn2 = jnp.sum(cur * cur, axis=0, keepdims=True)           # [1, St]
        inv_c = lax.rsqrt(jnp.maximum(cn2, _EPS * _EPS))          # = 1/max(||c||, eps)

        # Pass 1: per-frame cosine weight -> exp.  Only [1, St] values kept.
        exps = []
        denom = None
        for t in range(T):
            xt = frame_refs[t][...].astype(jnp.float32)           # [C, St]
            dot = jnp.sum(xt * cur, axis=0, keepdims=True)        # [1, St]
            xn2 = jnp.sum(xt * xt, axis=0, keepdims=True)         # [1, St]
            inv_x = lax.rsqrt(jnp.maximum(xn2, _EPS * _EPS))      # = 1/max(||x||, eps)
            w = dot * inv_x * inv_c                               # cosine in [-1, 1]
            e = jnp.exp(w)                                        # safe: |w| <= 1
            exps.append(e)
            denom = e if denom is None else denom + e
        inv_denom = pl.reciprocal(denom)                          # exact 1/x

        # Pass 2: weighted sum over frames, accumulated in f32.
        acc = None
        for t in range(T):
            xt = frame_refs[t][...].astype(jnp.float32)           # VMEM re-read, cheap
            term = xt * (exps[t] * inv_denom)
            acc = term if acc is None else acc + term
        o_ref[...] = acc.astype(o_ref.dtype)

    return kernel


def _choose_s_tile(S, T, C, itemsize, budget_bytes=6 * 1024 * 1024):
    """Largest multiple-of-128 divisor of S whose double-buffered DMA footprint
    (T input blocks + 1 output block, x2 buffers each) stays under budget.
    Conservative so it fits every generation's scoped-VMEM default (incl. v5e)."""
    if S % 128 != 0:
        return S                                   # full-extent block is always legal
    per_lane = 2 * (T + 1) * C * itemsize          # bytes per tile lane, double-buffered
    max_lanes = max(128, (budget_bytes // per_lane) // 128 * 128)
    if S <= max_lanes:
        return S
    best = None
    t = 128
    while t <= max_lanes:
        if S % t == 0:
            best = t
        t += 128
    return best if best is not None else S


def adaptive_weight_aggregation(xs, reference_frame_idx, *, s_tile=None):
    """xs: list of T arrays, each [N, C, H, W]. Returns [N, C, H, W] (input dtype)."""
    xs = list(xs)
    T = len(xs)
    N, C, H, W = xs[0].shape
    S = H * W
    dtype = xs[0].dtype
    itemsize = jnp.dtype(dtype).itemsize

    # Free reshape (contiguous) — no extra HBM traffic, unlike jnp.stack.
    xs_flat = [x.reshape(N, C, S) for x in xs]

    if s_tile is None:
        s_tile = _choose_s_tile(S, T, C, itemsize)
    assert S % s_tile == 0, "spatial extent must be divisible by the tile"

    # TODO(synk): if the real model's C < 8 (f32) / 16 (bf16), the sublane axis
    # is mostly padding; fold spatial rows into sublanes for those shapes.

    kernel = _make_kernel(T, int(reference_frame_idx))

    block_map = lambda n, s: (n, 0, s)
    in_specs = [pl.BlockSpec((None, C, s_tile), block_map) for _ in range(T)]
    out_spec = pl.BlockSpec((None, C, s_tile), block_map)

    cost = pl.CostEstimate(
        flops=6 * T * N * C * S,
        transcendentals=T * N * S,
        bytes_accessed=(T + 1) * N * C * S * itemsize,
    )

    out = pl.pallas_call(
        kernel,
        out_shape=jax.ShapeDtypeStruct((N, C, S), dtype),
        grid_spec=pltpu.PrefetchScalarGridSpec(
            num_scalar_prefetch=0,
            grid=(N, S // s_tile),
            in_specs=in_specs,
            out_specs=out_spec,
        ),
        compiler_params=pltpu.CompilerParams(
            dimension_semantics=("parallel", "parallel")),
        cost_estimate=cost,
    )(*xs_flat)

    return out.reshape(N, C, H, W)


def _reference_jax(xs, reference_frame_idx):
    """Pure-JAX re-implementation of the torch forward, for verification."""
    x = jnp.stack(xs).astype(jnp.float32)               # [T, N, C, H, W]
    cur = x[reference_frame_idx][None]
    cur = jnp.broadcast_to(cur, x.shape)
    tub = jnp.transpose(x, (1, 0, 2, 3, 4))              # [N, T, C, H, W]
    cur = jnp.transpose(cur, (1, 0, 2, 3, 4))

    def l2n(a):
        n = jnp.sqrt(jnp.sum(a * a, axis=2, keepdims=True))
        return a / jnp.maximum(n, _EPS)

    w = jnp.sum(l2n(tub) * l2n(cur), axis=2, keepdims=True)   # [N, T, 1, H, W]
    w = jax.nn.softmax(w, axis=1)
    return jnp.sum(w * tub, axis=1)                            # [N, C, H, W]


if __name__ == "__main__":
    key = jax.random.PRNGKey(0)
    T, N, C, H, W = 8, 2, 4, 16, 16
    keys = jax.random.split(key, T)
    xs = [jax.random.normal(k, (N, C, H, W), dtype=jnp.float32) for k in keys]
    reference_frame_idx = 3

    out = adaptive_weight_aggregation(xs, reference_frame_idx)
    out = jax.block_until_ready(out)

    ref = _reference_jax(xs, reference_frame_idx)
    assert out.shape == (N, C, H, W)
    assert out.dtype == xs[0].dtype
    assert jnp.max(jnp.abs(out.astype(jnp.float32) - ref)) < 1e-4, "mismatch vs JAX reference"

    print("KERNEL_OK")
</pallas_src>

<mosaic_0001>
module attributes {stable_mosaic.version = 11 : i64} {
  func.func @kernel(%arg0: i32, %arg1: i32, %arg2: memref<1x4x256xf32, #tpu.memory_space<vmem>>, %arg3: memref<1x4x256xf32, #tpu.memory_space<vmem>>, %arg4: memref<1x4x256xf32, #tpu.memory_space<vmem>>, %arg5: memref<1x4x256xf32, #tpu.memory_space<vmem>>, %arg6: memref<1x4x256xf32, #tpu.memory_space<vmem>>, %arg7: memref<1x4x256xf32, #tpu.memory_space<vmem>>, %arg8: memref<1x4x256xf32, #tpu.memory_space<vmem>>, %arg9: memref<1x4x256xf32, #tpu.memory_space<vmem>>, %arg10: memref<1x4x256xf32, #tpu.memory_space<vmem>>) attributes {dimension_semantics = [#tpu.dimension_semantics<parallel>, #tpu.dimension_semantics<parallel>], iteration_bounds = array<i64: 2, 1>, scalar_prefetch = 0 : i64, scratch_operands = 0 : i64, tpu.core_type = #tpu.core_type<tc>, window_params = [{transform_indices = @transform_0, window_bounds = array<i64: 1, 4, 256>}, {transform_indices = @transform_1, window_bounds = array<i64: 1, 4, 256>}, {transform_indices = @transform_2, window_bounds = array<i64: 1, 4, 256>}, {transform_indices = @transform_3, window_bounds = array<i64: 1, 4, 256>}, {transform_indices = @transform_4, window_bounds = array<i64: 1, 4, 256>}, {transform_indices = @transform_5, window_bounds = array<i64: 1, 4, 256>}, {transform_indices = @transform_6, window_bounds = array<i64: 1, 4, 256>}, {transform_indices = @transform_7, window_bounds = array<i64: 1, 4, 256>}, {transform_indices = @transform_8, window_bounds = array<i64: 1, 4, 256>}]} {
    %c0 = arith.constant 0 : index
    %c0_0 = arith.constant 0 : index
    %c0_1 = arith.constant 0 : index
    %0 = vector.load %arg5[%c0, %c0_0, %c0_1] : memref<1x4x256xf32, #tpu.memory_space<vmem>>, vector<1x4x256xf32>
    %1 = vector.shape_cast %0 : vector<1x4x256xf32> to vector<4x256xf32>
    %2 = arith.mulf %1, %1 : vector<4x256xf32>
    %cst = arith.constant dense<0.000000e+00> : vector<256xf32>
    %3 = vector.multi_reduction <add>, %2, %cst [0] : vector<4x256xf32> to vector<256xf32>
    %4 = vector.shape_cast %3 : vector<256xf32> to vector<1x256xf32>
    %cst_2 = arith.constant 1.000000e-24 : f32
    %5 = vector.broadcast %cst_2 : f32 to vector<1x256xf32>
    %6 = arith.maximumf %4, %5 : vector<1x256xf32>
    %7 = math.rsqrt %6 : vector<1x256xf32>
    %c0_3 = arith.constant 0 : index
    %c0_4 = arith.constant 0 : index
    %c0_5 = arith.constant 0 : index
    %8 = vector.load %arg2[%c0_3, %c0_4, %c0_5] : memref<1x4x256xf32, #tpu.memory_space<vmem>>, vector<1x4x256xf32>
    %9 = vector.shape_cast %8 : vector<1x4x256xf32> to vector<4x256xf32>
    %10 = arith.mulf %9, %1 : vector<4x256xf32>
    %cst_6 = arith.constant dense<0.000000e+00> : vector<256xf32>
    %11 = vector.multi_reduction <add>, %10, %cst_6 [0] : vector<4x256xf32> to vector<256xf32>
    %12 = vector.shape_cast %11 : vector<256xf32> to vector<1x256xf32>
    %13 = arith.mulf %9, %9 : vector<4x256xf32>
    %cst_7 = arith.constant dense<0.000000e+00> : vector<256xf32>
    %14 = vector.multi_reduction <add>, %13, %cst_7 [0] : vector<4x256xf32> to vector<256xf32>
    %15 = vector.shape_cast %14 : vector<256xf32> to vector<1x256xf32>
    %cst_8 = arith.constant 1.000000e-24 : f32
    %16 = vector.broadcast %cst_8 : f32 to vector<1x256xf32>
    %17 = arith.maximumf %15, %16 : vector<1x256xf32>
    %18 = math.rsqrt %17 : vector<1x256xf32>
    %19 = arith.mulf %12, %18 : vector<1x256xf32>
    %20 = arith.mulf %19, %7 : vector<1x256xf32>
    %21 = math.exp %20 : vector<1x256xf32>
    %c0_9 = arith.constant 0 : index
    %c0_10 = arith.constant 0 : index
    %c0_11 = arith.constant 0 : index
    %22 = vector.load %arg3[%c0_9, %c0_10, %c0_11] : memref<1x4x256xf32, #tpu.memory_space<vmem>>, vector<1x4x256xf32>
    %23 = vector.shape_cast %22 : vector<1x4x256xf32> to vector<4x256xf32>
    %24 = arith.mulf %23, %1 : vector<4x256xf32>
    %cst_12 = arith.constant dense<0.000000e+00> : vector<256xf32>
    %25 = vector.multi_reduction <add>, %24, %cst_12 [0] : vector<4x256xf32> to vector<256xf32>
    %26 = vector.shape_cast %25 : vector<256xf32> to vector<1x256xf32>
    %27 = arith.mulf %23, %23 : vector<4x256xf32>
    %cst_13 = arith.constant dense<0.000000e+00> : vector<256xf32>
    %28 = vector.multi_reduction <add>, %27, %cst_13 [0] : vector<4x256xf32> to vector<256xf32>
    %29 = vector.shape_cast %28 : vector<256xf32> to vector<1x256xf32>
    %cst_14 = arith.constant 1.000000e-24 : f32
    %30 = vector.broadcast %cst_14 : f32 to vector<1x256xf32>
    %31 = arith.maximumf %29, %30 : vector<1x256xf32>
    %32 = math.rsqrt %31 : vector<1x256xf32>
    %33 = arith.mulf %26, %32 : vector<1x256xf32>
    %34 = arith.mulf %33, %7 : vector<1x256xf32>
    %35 = math.exp %34 : vector<1x256xf32>
    %36 = arith.addf %21, %35 : vector<1x256xf32>
    %c0_15 = arith.constant 0 : index
    %c0_16 = arith.constant 0 : index
    %c0_17 = arith.constant 0 : index
    %37 = vector.load %arg4[%c0_15, %c0_16, %c0_17] : memref<1x4x256xf32, #tpu.memory_space<vmem>>, vector<1x4x256xf32>
    %38 = vector.shape_cast %37 : vector<1x4x256xf32> to vector<4x256xf32>
    %39 = arith.mulf %38, %1 : vector<4x256xf32>
    %cst_18 = arith.constant dense<0.000000e+00> : vector<256xf32>
    %40 = vector.multi_reduction <add>, %39, %cst_18 [0] : vector<4x256xf32> to vector<256xf32>
    %41 = vector.shape_cast %40 : vector<256xf32> to vector<1x256xf32>
    %42 = arith.mulf %38, %38 : vector<4x256xf32>
    %cst_19 = arith.constant dense<0.000000e+00> : vector<256xf32>
    %43 = vector.multi_reduction <add>, %42, %cst_19 [0] : vector<4x256xf32> to vector<256xf32>
    %44 = vector.shape_cast %43 : vector<256xf32> to vector<1x256xf32>
    %cst_20 = arith.constant 1.000000e-24 : f32
    %45 = vector.broadcast %cst_20 : f32 to vector<1x256xf32>
    %46 = arith.maximumf %44, %45 : vector<1x256xf32>
    %47 = math.rsqrt %46 : vector<1x256xf32>
    %48 = arith.mulf %41, %47 : vector<1x256xf32>
    %49 = arith.mulf %48, %7 : vector<1x256xf32>
    %50 = math.exp %49 : vector<1x256xf32>
    %51 = arith.addf %36, %50 : vector<1x256xf32>
    %c0_21 = arith.constant 0 : index
    %c0_22 = arith.constant 0 : index
    %c0_23 = arith.constant 0 : index
    %52 = vector.load %arg5[%c0_21, %c0_22, %c0_23] : memref<1x4x256xf32, #tpu.memory_space<vmem>>, vector<1x4x256xf32>
    %53 = vector.shape_cast %52 : vector<1x4x256xf32> to vector<4x256xf32>
    %54 = arith.mulf %53, %1 : vector<4x256xf32>
    %cst_24 = arith.constant dense<0.000000e+00> : vector<256xf32>
    %55 = vector.multi_reduction <add>, %54, %cst_24 [0] : vector<4x256xf32> to vector<256xf32>
    %56 = vector.shape_cast %55 : vector<256xf32> to vector<1x256xf32>
    %57 = arith.mulf %53, %53 : vector<4x256xf32>
    %cst_25 = arith.constant dense<0.000000e+00> : vector<256xf32>
    %58 = vector.multi_reduction <add>, %57, %cst_25 [0] : vector<4x256xf32> to vector<256xf32>
    %59 = vector.shape_cast %58 : vector<256xf32> to vector<1x256xf32>
    %cst_26 = arith.constant 1.000000e-24 : f32
    %60 = vector.broadcast %cst_26 : f32 to vector<1x256xf32>
    %61 = arith.maximumf %59, %60 : vector<1x256xf32>
    %62 = math.rsqrt %61 : vector<1x256xf32>
    %63 = arith.mulf %56, %62 : vector<1x256xf32>
    %64 = arith.mulf %63, %7 : vector<1x256xf32>
    %65 = math.exp %64 : vector<1x256xf32>
    %66 = arith.addf %51, %65 : vector<1x256xf32>
    %c0_27 = arith.constant 0 : index
    %c0_28 = arith.constant 0 : index
    %c0_29 = arith.constant 0 : index
    %67 = vector.load %arg6[%c0_27, %c0_28, %c0_29] : memref<1x4x256xf32, #tpu.memory_space<vmem>>, vector<1x4x256xf32>
    %68 = vector.shape_cast %67 : vector<1x4x256xf32> to vector<4x256xf32>
    %69 = arith.mulf %68, %1 : vector<4x256xf32>
    %cst_30 = arith.constant dense<0.000000e+00> : vector<256xf32>
    %70 = vector.multi_reduction <add>, %69, %cst_30 [0] : vector<4x256xf32> to vector<256xf32>
    %71 = vector.shape_cast %70 : vector<256xf32> to vector<1x256xf32>
    %72 = arith.mulf %68, %68 : vector<4x256xf32>
    %cst_31 = arith.constant dense<0.000000e+00> : vector<256xf32>
    %73 = vector.multi_reduction <add>, %72, %cst_31 [0] : vector<4x256xf32> to vector<256xf32>
    %74 = vector.shape_cast %73 : vector<256xf32> to vector<1x256xf32>
    %cst_32 = arith.constant 1.000000e-24 : f32
    %75 = vector.broadcast %cst_32 : f32 to vector<1x256xf32>
    %76 = arith.maximumf %74, %75 : vector<1x256xf32>
    %77 = math.rsqrt %76 : vector<1x256xf32>
    %78 = arith.mulf %71, %77 : vector<1x256xf32>
    %79 = arith.mulf %78, %7 : vector<1x256xf32>
    %80 = math.exp %79 : vector<1x256xf32>
    %81 = arith.addf %66, %80 : vector<1x256xf32>
    %c0_33 = arith.constant 0 : index
    %c0_34 = arith.constant 0 : index
    %c0_35 = arith.constant 0 : index
    %82 = vector.load %arg7[%c0_33, %c0_34, %c0_35] : memref<1x4x256xf32, #tpu.memory_space<vmem>>, vector<1x4x256xf32>
    %83 = vector.shape_cast %82 : vector<1x4x256xf32> to vector<4x256xf32>
    %84 = arith.mulf %83, %1 : vector<4x256xf32>
    %cst_36 = arith.constant dense<0.000000e+00> : vector<256xf32>
    %85 = vector.multi_reduction <add>, %84, %cst_36 [0] : vector<4x256xf32> to vector<256xf32>
    %86 = vector.shape_cast %85 : vector<256xf32> to vector<1x256xf32>
    %87 = arith.mulf %83, %83 : vector<4x256xf32>
    %cst_37 = arith.constant dense<0.000000e+00> : vector<256xf32>
    %88 = vector.multi_reduction <add>, %87, %cst_37 [0] : vector<4x256xf32> to vector<256xf32>
    %89 = vector.shape_cast %88 : vector<256xf32> to vector<1x256xf32>
    %cst_38 = arith.constant 1.000000e-24 : f32
    %90 = vector.broadcast %cst_38 : f32 to vector<1x256xf32>
    %91 = arith.maximumf %89, %90 : vector<1x256xf32>
    %92 = math.rsqrt %91 : vector<1x256xf32>
    %93 = arith.mulf %86, %92 : vector<1x256xf32>
    %94 = arith.mulf %93, %7 : vector<1x256xf32>
    %95 = math.exp %94 : vector<1x256xf32>
    %96 = arith.addf %81, %95 : vector<1x256xf32>
    %c0_39 = arith.constant 0 : index
    %c0_40 = arith.constant 0 : index
    %c0_41 = arith.constant 0 : index
    %97 = vector.load %arg8[%c0_39, %c0_40, %c0_41] : memref<1x4x256xf32, #tpu.memory_space<vmem>>, vector<1x4x256xf32>
    %98 = vector.shape_cast %97 : vector<1x4x256xf32> to vector<4x256xf32>
    %99 = arith.mulf %98, %1 : vector<4x256xf32>
    %cst_42 = arith.constant dense<0.000000e+00> : vector<256xf32>
    %100 = vector.multi_reduction <add>, %99, %cst_42 [0] : vector<4x256xf32> to vector<256xf32>
    %101 = vector.shape_cast %100 : vector<256xf32> to vector<1x256xf32>
    %102 = arith.mulf %98, %98 : vector<4x256xf32>
    %cst_43 = arith.constant dense<0.000000e+00> : vector<256xf32>
    %103 = vector.multi_reduction <add>, %102, %cst_43 [0] : vector<4x256xf32> to vector<256xf32>
    %104 = vector.shape_cast %103 : vector<256xf32> to vector<1x256xf32>
    %cst_44 = arith.constant 1.000000e-24 : f32
    %105 = vector.broadcast %cst_44 : f32 to vector<1x256xf32>
    %106 = arith.maximumf %104, %105 : vector<1x256xf32>
    %107 = math.rsqrt %106 : vector<1x256xf32>
    %108 = arith.mulf %101, %107 : vector<1x256xf32>
    %109 = arith.mulf %108, %7 : vector<1x256xf32>
    %110 = math.exp %109 : vector<1x256xf32>
    %111 = arith.addf %96, %110 : vector<1x256xf32>
    %c0_45 = arith.constant 0 : index
    %c0_46 = arith.constant 0 : index
    %c0_47 = arith.constant 0 : index
    %112 = vector.load %arg9[%c0_45, %c0_46, %c0_47] : memref<1x4x256xf32, #tpu.memory_space<vmem>>, vector<1x4x256xf32>
    %113 = vector.shape_cast %112 : vector<1x4x256xf32> to vector<4x256xf32>
    %114 = arith.mulf %113, %1 : vector<4x256xf32>
    %cst_48 = arith.constant dense<0.000000e+00> : vector<256xf32>
    %115 = vector.multi_reduction <add>, %114, %cst_48 [0] : vector<4x256xf32> to vector<256xf32>
    %116 = vector.shape_cast %115 : vector<256xf32> to vector<1x256xf32>
    %117 = arith.mulf %113, %113 : vector<4x256xf32>
    %cst_49 = arith.constant dense<0.000000e+00> : vector<256xf32>
    %118 = vector.multi_reduction <add>, %117, %cst_49 [0] : vector<4x256xf32> to vector<256xf32>
    %119 = vector.shape_cast %118 : vector<256xf32> to vector<1x256xf32>
    %cst_50 = arith.constant 1.000000e-24 : f32
    %120 = vector.broadcast %cst_50 : f32 to vector<1x256xf32>
    %121 = arith.maximumf %119, %120 : vector<1x256xf32>
    %122 = math.rsqrt %121 : vector<1x256xf32>
    %123 = arith.mulf %116, %122 : vector<1x256xf32>
    %124 = arith.mulf %123, %7 : vector<1x256xf32>
    %125 = math.exp %124 : vector<1x256xf32>
    %126 = arith.addf %111, %125 : vector<1x256xf32>
    %127 = tpu.reciprocal %126 : vector<1x256xf32> -> vector<1x256xf32>
    %c0_51 = arith.constant 0 : index
    %c0_52 = arith.constant 0 : index
    %c0_53 = arith.constant 0 : index
    %128 = vector.load %arg2[%c0_51, %c0_52, %c0_53] : memref<1x4x256xf32, #tpu.memory_space<vmem>>, vector<1x4x256xf32>
    %129 = vector.shape_cast %128 : vector<1x4x256xf32> to vector<4x256xf32>
    %130 = arith.mulf %21, %127 : vector<1x256xf32>
    %131 = vector.broadcast %130 : vector<1x256xf32> to vector<4x256xf32>
    %132 = arith.mulf %129, %131 : vector<4x256xf32>
    %c0_54 = arith.constant 0 : index
    %c0_55 = arith.constant 0 : index
    %c0_56 = arith.constant 0 : index
    %133 = vector.load %arg3[%c0_54, %c0_55, %c0_56] : memref<1x4x256xf32, #tpu.memory_space<vmem>>, vector<1x4x256xf32>
    %134 = vector.shape_cast %133 : vector<1x4x256xf32> to vector<4x256xf32>
    %135 = arith.mulf %35, %127 : vector<1x256xf32>
    %136 = vector.broadcast %135 : vector<1x256xf32> to vector<4x256xf32>
    %137 = arith.mulf %134, %136 : vector<4x256xf32>
    %138 = arith.addf %132, %137 : vector<4x256xf32>
    %c0_57 = arith.constant 0 : index
    %c0_58 = arith.constant 0 : index
    %c0_59 = arith.constant 0 : index
    %139 = vector.load %arg4[%c0_57, %c0_58, %c0_59] : memref<1x4x256xf32, #tpu.memory_space<vmem>>, vector<1x4x256xf32>
    %140 = vector.shape_cast %139 : vector<1x4x256xf32> to vector<4x256xf32>
    %141 = arith.mulf %50, %127 : vector<1x256xf32>
    %142 = vector.broadcast %141 : vector<1x256xf32> to vector<4x256xf32>
    %143 = arith.mulf %140, %142 : vector<4x256xf32>
    %144 = arith.addf %138, %143 : vector<4x256xf32>
    %c0_60 = arith.constant 0 : index
    %c0_61 = arith.constant 0 : index
    %c0_62 = arith.constant 0 : index
    %145 = vector.load %arg5[%c0_60, %c0_61, %c0_62] : memref<1x4x256xf32, #tpu.memory_space<vmem>>, vector<1x4x256xf32>
    %146 = vector.shape_cast %145 : vector<1x4x256xf32> to vector<4x256xf32>
    %147 = arith.mulf %65, %127 : vector<1x256xf32>
    %148 = vector.broadcast %147 : vector<1x256xf32> to vector<4x256xf32>
    %149 = arith.mulf %146, %148 : vector<4x256xf32>
    %150 = arith.addf %144, %149 : vector<4x256xf32>
    %c0_63 = arith.constant 0 : index
    %c0_64 = arith.constant 0 : index
    %c0_65 = arith.constant 0 : index
    %151 = vector.load %arg6[%c0_63, %c0_64, %c0_65] : memref<1x4x256xf32, #tpu.memory_space<vmem>>, vector<1x4x256xf32>
    %152 = vector.shape_cast %151 : vector<1x4x256xf32> to vector<4x256xf32>
    %153 = arith.mulf %80, %127 : vector<1x256xf32>
    %154 = vector.broadcast %153 : vector<1x256xf32> to vector<4x256xf32>
    %155 = arith.mulf %152, %154 : vector<4x256xf32>
    %156 = arith.addf %150, %155 : vector<4x256xf32>
    %c0_66 = arith.constant 0 : index
    %c0_67 = arith.constant 0 : index
    %c0_68 = arith.constant 0 : index
    %157 = vector.load %arg7[%c0_66, %c0_67, %c0_68] : memref<1x4x256xf32, #tpu.memory_space<vmem>>, vector<1x4x256xf32>
    %158 = vector.shape_cast %157 : vector<1x4x256xf32> to vector<4x256xf32>
    %159 = arith.mulf %95, %127 : vector<1x256xf32>
    %160 = vector.broadcast %159 : vector<1x256xf32> to vector<4x256xf32>
    %161 = arith.mulf %158, %160 : vector<4x256xf32>
    %162 = arith.addf %156, %161 : vector<4x256xf32>
    %c0_69 = arith.constant 0 : index
    %c0_70 = arith.constant 0 : index
    %c0_71 = arith.constant 0 : index
    %163 = vector.load %arg8[%c0_69, %c0_70, %c0_71] : memref<1x4x256xf32, #tpu.memory_space<vmem>>, vector<1x4x256xf32>
    %164 = vector.shape_cast %163 : vector<1x4x256xf32> to vector<4x256xf32>
    %165 = arith.mulf %110, %127 : vector<1x256xf32>
    %166 = vector.broadcast %165 : vector<1x256xf32> to vector<4x256xf32>
    %167 = arith.mulf %164, %166 : vector<4x256xf32>
    %168 = arith.addf %162, %167 : vector<4x256xf32>
    %c0_72 = arith.constant 0 : index
    %c0_73 = arith.constant 0 : index
    %c0_74 = arith.constant 0 : index
    %169 = vector.load %arg9[%c0_72, %c0_73, %c0_74] : memref<1x4x256xf32, #tpu.memory_space<vmem>>, vector<1x4x256xf32>
    %170 = vector.shape_cast %169 : vector<1x4x256xf32> to vector<4x256xf32>
    %171 = arith.mulf %125, %127 : vector<1x256xf32>
    %172 = vector.broadcast %171 : vector<1x256xf32> to vector<4x256xf32>
    %173 = arith.mulf %170, %172 : vector<4x256xf32>
    %174 = arith.addf %168, %173 : vector<4x256xf32>
    %c0_75 = arith.constant 0 : index
    %c0_76 = arith.constant 0 : index
    %c0_77 = arith.constant 0 : index
    %175 = vector.load %arg10[%c0_75, %c0_76, %c0_77] : memref<1x4x256xf32, #tpu.memory_space<vmem>>, vector<1x4x256xf32>
    %176 = vector.shape_cast %175 : vector<1x4x256xf32> to vector<4x256xf32>
    %177 = vector.shape_cast %174 : vector<4x256xf32> to vector<1x4x256xf32>
    tpu.vector_store %arg10[%c0_75, %c0_76, %c0_77], %177 {strides = array<i32>} : memref<1x4x256xf32, #tpu.memory_space<vmem>>, vector<1x4x256xf32>,
    return
  }
  func.func @transform_0(%arg0: i32, %arg1: i32) -> (i32, i32, i32) {
    %c0_i32 = arith.constant 0 : i32
    %c0_i32_0 = arith.constant 0 : i32
    return %arg0, %c0_i32, %arg1 : i32, i32, i32
  }
  func.func @transform_1(%arg0: i32, %arg1: i32) -> (i32, i32, i32) {
    %c0_i32 = arith.constant 0 : i32
    %c0_i32_0 = arith.constant 0 : i32
    return %arg0, %c0_i32, %arg1 : i32, i32, i32
  }
  func.func @transform_2(%arg0: i32, %arg1: i32) -> (i32, i32, i32) {
    %c0_i32 = arith.constant 0 : i32
    %c0_i32_0 = arith.constant 0 : i32
    return %arg0, %c0_i32, %arg1 : i32, i32, i32
  }
  func.func @transform_3(%arg0: i32, %arg1: i32) -> (i32, i32, i32) {
    %c0_i32 = arith.constant 0 : i32
    %c0_i32_0 = arith.constant 0 : i32
    return %arg0, %c0_i32, %arg1 : i32, i32, i32
  }
  func.func @transform_4(%arg0: i32, %arg1: i32) -> (i32, i32, i32) {
    %c0_i32 = arith.constant 0 : i32
    %c0_i32_0 = arith.constant 0 : i32
    return %arg0, %c0_i32, %arg1 : i32, i32, i32
  }
  func.func @transform_5(%arg0: i32, %arg1: i32) -> (i32, i32, i32) {
    %c0_i32 = arith.constant 0 : i32
    %c0_i32_0 = arith.constant 0 : i32
    return %arg0, %c0_i32, %arg1 : i32, i32, i32
  }
  func.func @transform_6(%arg0: i32, %arg1: i32) -> (i32, i32, i32) {
    %c0_i32 = arith.constant 0 : i32
    %c0_i32_0 = arith.constant 0 : i32
    return %arg0, %c0_i32, %arg1 : i32, i32, i32
  }
  func.func @transform_7(%arg0: i32, %arg1: i32) -> (i32, i32, i32) {
    %c0_i32 = arith.constant 0 : i32
    %c0_i32_0 = arith.constant 0 : i32
    return %arg0, %c0_i32, %arg1 : i32, i32, i32
  }
  func.func @transform_8(%arg0: i32, %arg1: i32) -> (i32, i32, i32) {
    %c0_i32 = arith.constant 0 : i32
    %c0_i32_0 = arith.constant 0 : i32
    return %arg0, %c0_i32, %arg1 : i32, i32, i32
  }
}

</mosaic_0001>

<llo_original>
// kernel: tpu_custom_call.1
$region0: #{tpu_custom_call.1}
  #allocation0 [shape = 'u32[]', space=smem, size = 0x4, offset = 0x4, fixed_abs, tag = 'smem constant byte address 0x4 - core index']
  #allocation1 [shape = 'u32[144,128]{1,0:T(1,128)}', space=vmem, size = 0x12000, scoped, tag = 'internal scratch']
  %s0 = inlined_call_operand.hbm [shape: f32[2,4,256], index: 0, kind: input, shape index: {}]
  %s1 = inlined_call_operand.hbm [shape: f32[2,4,256], index: 1, kind: input, shape index: {}]
  %s2 = inlined_call_operand.hbm [shape: f32[2,4,256], index: 2, kind: input, shape index: {}]
  %s3 = inlined_call_operand.hbm [shape: f32[2,4,256], index: 3, kind: input, shape index: {}]
  %s4 = inlined_call_operand.hbm [shape: f32[2,4,256], index: 4, kind: input, shape index: {}]
  %s5 = inlined_call_operand.vmem [shape: f32[2,4,256], index: 5, kind: input, shape index: {}]
  %s6 = inlined_call_operand.hbm [shape: f32[2,4,256], index: 6, kind: input, shape index: {}]
  %s7 = inlined_call_operand.hbm [shape: f32[2,4,256], index: 7, kind: input, shape index: {}]
  %s8 = inlined_call_operand.hbm [shape: f32[2,4,256], index: 8, kind: output, shape index: {}]
  %s9 = sld [smem:[#allocation0]]
  $region93: #{tpu_custom_call.1} parent=0
    _
  %s11 = ssub.s32 1, %s9
  %s12 = scalar_select 0, %s11, %s9
  $region1: #{tpu_custom_call.1} parent=0
    #allocation2 [shape = 'u8[8192]{0}', space=vmem, size = 0x2000, scoped, tag = 'input window, operand 0']
    #allocation3 [shape = 's32[2]{0}', space=sflag, size = 0x8, scoped, tag = 'scoped memory for tpu_custom_call.1']
    #allocation4 [shape = 's32[2]{0}', space=sflag, size = 0x8, scoped, tag = 'scoped memory for tpu_custom_call.1']
    #allocation5 [shape = 'u8[8192]{0}', space=vmem, size = 0x2000, scoped, tag = 'input window, operand 1']
    #allocation6 [shape = 's32[2]{0}', space=sflag, size = 0x8, scoped, tag = 'scoped memory for tpu_custom_call.1']
    #allocation7 [shape = 'u8[8192]{0}', space=vmem, size = 0x2000, scoped, tag = 'input window, operand 2']
    #allocation8 [shape = 'u8[8192]{0}', space=vmem, size = 0x2000, scoped, tag = 'input window, operand 3']
    #allocation9 [shape = 's32[2]{0}', space=sflag, size = 0x8, scoped, tag = 'scoped memory for tpu_custom_call.1']
    #allocation10 [shape = 'u8[8192]{0}', space=vmem, size = 0x2000, scoped, tag = 'input window, operand 4']
    #allocation11 [shape = 'u8[8192]{0}', space=vmem, size = 0x2000, scoped, tag = 'input window, operand 6']
    #allocation12 [shape = 's32[2]{0}', space=sflag, size = 0x8, scoped, tag = 'scoped memory for tpu_custom_call.1']
    #allocation13 [shape = 'u8[8192]{0}', space=vmem, size = 0x2000, scoped, tag = 'input window, operand 7']
    #allocation14 [shape = 'u8[8192]{0}', space=vmem, size = 0x2000, scoped, tag = 'output window, operand 0']
    %13 = vsyncpa [#allocation3], 0
    %s14 = scalar_lea.sflag [#allocation3], 1
    %15 = vsyncpa %s14, 0
    %16 = vsyncpa [#allocation6], 0
    %s17 = scalar_lea.sflag [#allocation6], 1
    %18 = vsyncpa %s17, 0
    %19 = vsyncpa [#allocation9], 0
    %s20 = scalar_lea.sflag [#allocation9], 1
    %21 = vsyncpa %s20, 0
    %22 = vsyncpa [#allocation12], 0
    %s23 = scalar_lea.sflag [#allocation12], 1
    %24 = vsyncpa %s23, 0
    %25 = vsyncpa [#allocation4], 0
    %s26 = scalar_lea.sflag [#allocation4], 1
    %27 = vsyncpa %s26, 0
    loop: start=0, step=1, limit=4
    $region2: #{tpu_custom_call.1} parent=1 // loop_pre_header
      _
    $region3: #{tpu_custom_call.1} parent=1 // loop_header
      %s29 = sphi 0, %s33
      %p30 = scmp.ge.s32.totalorder %s29, 4
      %s36 = sphi 0, %s48
      %s37 = sphi 0, %s44
      %s38 = sphi 0, %s36
      %s39 = sphi 0, %s37
      %s40 = sphi 0, %s38
      %s41 = sphi 0, %s39
      %s53 = sphi 0, %s55
      %s56 = sphi 0, %s53
      %s57 = sphi 0, %s56
      %s73 = sphi 0, %s57
      %s81 = sphi 0, %s83
      %s84 = sphi 0, %s81
      %s85 = sphi 0, %s84
      %s101 = sphi 0, %s85
      %s109 = sphi 0, %s111
      %s112 = sphi 0, %s109
      %s113 = sphi 0, %s112
      %s129 = sphi 0, %s113
      %s137 = sphi 0, %s139
      %s140 = sphi 0, %s137
      %s141 = sphi 0, %s140
      %s157 = sphi 0, %s141
      %s165 = sphi 0, %s167
      %s168 = sphi 0, %s165
      %s169 = sphi 0, %s168
      %s185 = sphi 0, %s169
      %s193 = sphi 0, %s195
      %s196 = sphi 0, %s193
      %s197 = sphi 0, %s196
      %s213 = sphi 0, %s197
      %s221 = sphi 0, %s223
      %s224 = sphi 0, %s221
      %s225 = sphi 0, %s224
      %s241 = sphi 0, %s225
      %s249 = sphi 0, %s251
      %s252 = sphi 0, %s249
      %s253 = sphi 0, %s252
      %s269 = sphi 0, %s253
      %s277 = sphi 0, %s279
      %s280 = sphi 0, %s277
      %s281 = sphi 0, %s280
      %s297 = sphi 0, %s281
    $region4: #{tpu_custom_call.1} parent=1 // loop_header_branch
      %32 = sbr.rel (%p30) target = $region8
    $region5: #{tpu_custom_call.1} parent=1 // loop_body
      %s34 = ssub.s32 %s29, 1
      %s35 = ssub.s32 %s29, 2
      %s42 = sadd.s32 1, %s37
      %p43 = scmp.ge.s32.totalorder %s42, 1
      %s44 = scalar_select %p43, 0, %s42
      %s45 = sadd.s32 1, %s36
      %s46 = scalar_select %p43, %s45, %s36
      %p47 = scmp.ge.s32.totalorder %s46, 2
      %s48 = scalar_select %p47, 0, %s46
      %s49 = ssub.s32 %s36, %s48
      %s50 = ssub.s32 %s37, %s44
      %s51 = sor.u32 %s49, %s50
      %p52 = scmp.eq.s32.totalorder %s51, 0
      %s54 = sadd.s32 %s53, 1
      %s55 = scalar_select %p52, %s53, %s54
      %p58 = pneg %p52
      %p59 = scmp.eq.s32.totalorder %s29, 1
      %p60 = por %p58, %p59
      %p61 = scmp.ne.s32.totalorder %s53, %s56
      %p62 = scmp.eq.s32.totalorder %s29, 0
      %p63 = por %p61, %p62
      %p64 = scmp.ne.s32.totalorder %s53, %s56
      %p65 = scmp.eq.s32.totalorder %s34, 1
      %p66 = por %p64, %p65
      %p67 = scmp.ne.s32.totalorder %s56, %s57
      %p68 = scmp.eq.s32.totalorder %s34, 0
      %p69 = por %p67, %p68
      %p70 = scmp.ne.s32.totalorder %s56, %s57
      %p71 = scmp.eq.s32.totalorder %s35, 1
      %p72 = por %p70, %p71
      %p74 = scmp.ne.s32.totalorder %s57, %s73
      %p75 = scmp.eq.s32.totalorder %s35, 0
      %p76 = por %p74, %p75
      %s77 = ssub.s32 %s36, %s48
      %s78 = ssub.s32 %s37, %s44
      %s79 = sor.u32 %s77, %s78
      %p80 = scmp.eq.s32.totalorder %s79, 0
      %s82 = sadd.s32 %s81, 1
      %s83 = scalar_select %p80, %s81, %s82
      %p86 = pneg %p80
      %p87 = scmp.eq.s32.totalorder %s29, 1
      %p88 = por %p86, %p87
      %p89 = scmp.ne.s32.totalorder %s81, %s84
      %p90 = scmp.eq.s32.totalorder %s29, 0
      %p91 = por %p89, %p90
      %p92 = scmp.ne.s32.totalorder %s81, %s84
      %p93 = scmp.eq.s32.totalorder %s34, 1
      %p94 = por %p92, %p93
      %p95 = scmp.ne.s32.totalorder %s84, %s85
      %p96 = scmp.eq.s32.totalorder %s34, 0
      %p97 = por %p95, %p96
      %p98 = scmp.ne.s32.totalorder %s84, %s85
      %p99 = scmp.eq.s32.totalorder %s35, 1
      %p100 = por %p98, %p99
      %p102 = scmp.ne.s32.totalorder %s85, %s101
      %p103 = scmp.eq.s32.totalorder %s35, 0
      %p104 = por %p102, %p103
      %s105 = ssub.s32 %s36, %s48
      %s106 = ssub.s32 %s37, %s44
      %s107 = sor.u32 %s105, %s106
      %p108 = scmp.eq.s32.totalorder %s107, 0
      %s110 = sadd.s32 %s109, 1
      %s111 = scalar_select %p108, %s109, %s110
      %p114 = pneg %p108
      %p115 = scmp.eq.s32.totalorder %s29, 1
      %p116 = por %p114, %p115
      %p117 = scmp.ne.s32.totalorder %s109, %s112
      %p118 = scmp.eq.s32.totalorder %s29, 0
      %p119 = por %p117, %p118
      %p120 = scmp.ne.s32.totalorder %s109, %s112
      %p121 = scmp.eq.s32.totalorder %s34, 1
      %p122 = por %p120, %p121
      %p123 = scmp.ne.s32.totalorder %s112, %s113
      %p124 = scmp.eq.s32.totalorder %s34, 0
      %p125 = por %p123, %p124
      %p126 = scmp.ne.s32.totalorder %s112, %s113
      %p127 = scmp.eq.s32.totalorder %s35, 1
      %p128 = por %p126, %p127
      %p130 = scmp.ne.s32.totalorder %s113, %s129
      %p131 = scmp.eq.s32.totalorder %s35, 0
      %p132 = por %p130, %p131
      %s133 = ssub.s32 %s36, %s48
      %s134 = ssub.s32 %s37, %s44
      %s135 = sor.u32 %s133, %s134
      %p136 = scmp.eq.s32.totalorder %s135, 0
      %s138 = sadd.s32 %s137, 1
      %s139 = scalar_select %p136, %s137, %s138
      %p142 = pneg %p136
      %p143 = scmp.eq.s32.totalorder %s29, 1
      %p144 = por %p142, %p143
      %p145 = scmp.ne.s32.totalorder %s137, %s140
      %p146 = scmp.eq.s32.totalorder %s29, 0
      %p147 = por %p145, %p146
      %p148 = scmp.ne.s32.totalorder %s137, %s140
      %p149 = scmp.eq.s32.totalorder %s34, 1
      %p150 = por %p148, %p149
      %p151 = scmp.ne.s32.totalorder %s140, %s141
      %p152 = scmp.eq.s32.totalorder %s34, 0
      %p153 = por %p151, %p152
      %p154 = scmp.ne.s32.totalorder %s140, %s141
      %p155 = scmp.eq.s32.totalorder %s35, 1
      %p156 = por %p154, %p155
      %p158 = scmp.ne.s32.totalorder %s141, %s157
      %p159 = scmp.eq.s32.totalorder %s35, 0
      %p160 = por %p158, %p159
      %s161 = ssub.s32 %s36, %s48
      %s162 = ssub.s32 %s37, %s44
      %s163 = sor.u32 %s161, %s162
      %p164 = scmp.eq.s32.totalorder %s163, 0
      %s166 = sadd.s32 %s165, 1
      %s167 = scalar_select %p164, %s165, %s166
      %p170 = pneg %p164
      %p171 = scmp.eq.s32.totalorder %s29, 1
      %p172 = por %p170, %p171
      %p173 = scmp.ne.s32.totalorder %s165, %s168
      %p174 = scmp.eq.s32.totalorder %s29, 0
      %p175 = por %p173, %p174
      %p176 = scmp.ne.s32.totalorder %s165, %s168
      %p177 = scmp.eq.s32.totalorder %s34, 1
      %p178 = por %p176, %p177
      %p179 = scmp.ne.s32.totalorder %s168, %s169
      %p180 = scmp.eq.s32.totalorder %s34, 0
      %p181 = por %p179, %p180
      %p182 = scmp.ne.s32.totalorder %s168, %s169
      %p183 = scmp.eq.s32.totalorder %s35, 1
      %p184 = por %p182, %p183
      %p186 = scmp.ne.s32.totalorder %s169, %s185
      %p187 = scmp.eq.s32.totalorder %s35, 0
      %p188 = por %p186, %p187
      %s189 = ssub.s32 %s36, %s48
      %s190 = ssub.s32 %s37, %s44
      %s191 = sor.u32 %s189, %s190
      %p192 = scmp.eq.s32.totalorder %s191, 0
      %s194 = sadd.s32 %s193, 1
      %s195 = scalar_select %p192, %s193, %s194
      %p198 = pneg %p192
      %p199 = scmp.eq.s32.totalorder %s29, 1
      %p200 = por %p198, %p199
      %p201 = scmp.ne.s32.totalorder %s193, %s196
      %p202 = scmp.eq.s32.totalorder %s29, 0
      %p203 = por %p201, %p202
      %p204 = scmp.ne.s32.totalorder %s193, %s196
      %p205 = scmp.eq.s32.totalorder %s34, 1
      %p206 = por %p204, %p205
      %p207 = scmp.ne.s32.totalorder %s196, %s197
      %p208 = scmp.eq.s32.totalorder %s34, 0
      %p209 = por %p207, %p208
      %p210 = scmp.ne.s32.totalorder %s196, %s197
      %p211 = scmp.eq.s32.totalorder %s35, 1
      %p212 = por %p210, %p211
      %p214 = scmp.ne.s32.totalorder %s197, %s213
      %p215 = scmp.eq.s32.totalorder %s35, 0
      %p216 = por %p214, %p215
      %s217 = ssub.s32 %s36, %s48
      %s218 = ssub.s32 %s37, %s44
      %s219 = sor.u32 %s217, %s218
      %p220 = scmp.eq.s32.totalorder %s219, 0
      %s222 = sadd.s32 %s221, 1
      %s223 = scalar_select %p220, %s221, %s222
      %p226 = pneg %p220
      %p227 = scmp.eq.s32.totalorder %s29, 1
      %p228 = por %p226, %p227
      %p229 = scmp.ne.s32.totalorder %s221, %s224
      %p230 = scmp.eq.s32.totalorder %s29, 0
      %p231 = por %p229, %p230
      %p232 = scmp.ne.s32.totalorder %s221, %s224
      %p233 = scmp.eq.s32.totalorder %s34, 1
      %p234 = por %p232, %p233
      %p235 = scmp.ne.s32.totalorder %s224, %s225
      %p236 = scmp.eq.s32.totalorder %s34, 0
      %p237 = por %p235, %p236
      %p238 = scmp.ne.s32.totalorder %s224, %s225
      %p239 = scmp.eq.s32.totalorder %s35, 1
      %p240 = por %p238, %p239
      %p242 = scmp.ne.s32.totalorder %s225, %s241
      %p243 = scmp.eq.s32.totalorder %s35, 0
      %p244 = por %p242, %p243
      %s245 = ssub.s32 %s36, %s48
      %s246 = ssub.s32 %s37, %s44
      %s247 = sor.u32 %s245, %s246
      %p248 = scmp.eq.s32.totalorder %s247, 0
      %s250 = sadd.s32 %s249, 1
      %s251 = scalar_select %p248, %s249, %s250
      %p254 = pneg %p248
      %p255 = scmp.eq.s32.totalorder %s29, 1
      %p256 = por %p254, %p255
      %p257 = scmp.ne.s32.totalorder %s249, %s252
      %p258 = scmp.eq.s32.totalorder %s29, 0
      %p259 = por %p257, %p258
      %p260 = scmp.ne.s32.totalorder %s249, %s252
      %p261 = scmp.eq.s32.totalorder %s34, 1
      %p262 = por %p260, %p261
      %p263 = scmp.ne.s32.totalorder %s252, %s253
      %p264 = scmp.eq.s32.totalorder %s34, 0
      %p265 = por %p263, %p264
      %p266 = scmp.ne.s32.totalorder %s252, %s253
      %p267 = scmp.eq.s32.totalorder %s35, 1
      %p268 = por %p266, %p267
      %p270 = scmp.ne.s32.totalorder %s253, %s269
      %p271 = scmp.eq.s32.totalorder %s35, 0
      %p272 = por %p270, %p271
      %s273 = ssub.s32 %s36, %s48
      %s274 = ssub.s32 %s37, %s44
      %s275 = sor.u32 %s273, %s274
      %p276 = scmp.eq.s32.totalorder %s275, 0
      %s278 = sadd.s32 %s277, 1
      %s279 = scalar_select %p276, %s277, %s278
      %p282 = pneg %p276
      %p283 = scmp.eq.s32.totalorder %s29, 1
      %p284 = por %p282, %p283
      %p285 = scmp.ne.s32.totalorder %s277, %s280
      %p286 = scmp.eq.s32.totalorder %s29, 0
      %p287 = por %p285, %p286
      %p288 = scmp.ne.s32.totalorder %s277, %s280
      %p289 = scmp.eq.s32.totalorder %s34, 1
      %p290 = por %p288, %p289
      %p291 = scmp.ne.s32.totalorder %s280, %s281
      %p292 = scmp.eq.s32.totalorder %s34, 0
      %p293 = por %p291, %p292
      %p294 = scmp.ne.s32.totalorder %s280, %s281
      %p295 = scmp.eq.s32.totalorder %s35, 1
      %p296 = por %p294, %p295
      %p298 = scmp.ne.s32.totalorder %s281, %s297
      %p299 = scmp.eq.s32.totalorder %s35, 0
      %p300 = por %p298, %p299
      %p301 = scmp.le.s32.totalorder 1, %s29
      %p302 = scmp.lt.s32.totalorder %s29, 3
      %p303 = pnand %p301, %p302
      %p304 = pneg %p303
      // Predicated region
      $region9: #{tpu_custom_call.1} parent=5 // pred_check
        _
      $region10: #{tpu_custom_call.1} parent=5 // pred_check_branch
        %306 = sbr.rel (%p303) target = $region12
      $region11: #{tpu_custom_call.1} parent=5 // pred_region
        %s307 = ssub.s32 %s29, 1
      $region12: #{tpu_custom_call.1} parent=5 // pred_fallthru
        _
      %p308 = scmp.lt.s32.totalorder %s29, 2
      // Predicated region
      $region13: #{tpu_custom_call.1} parent=5 // pred_check
        %p309 = pneg %p308
      $region14: #{tpu_custom_call.1} parent=5 // pred_check_branch
        %311 = sbr.rel (%p309) target = $region16
      $region15: #{tpu_custom_call.1} parent=5 // pred_region
        // Predicated region
        $region17: #{tpu_custom_call.1} parent=15 // pred_check
          %p312 = pneg %p63
        $region18: #{tpu_custom_call.1} parent=15 // pred_check_branch
          %314 = sbr.rel (%p312) target = $region20
        $region19: #{tpu_custom_call.1} parent=15 // pred_region
          %s315 = sand.u32 %s53, 1
          %s316 = scalar_lea.sflag [#allocation3], %s315
          %s317 = sand.u32 %s53, 1
          %s318 = smul.addr %s317, 8
          %s319 = scalar_lea.vmem [#allocation2], %s318
          %s320 = smul.u32 2, %s37
          %s322 = ssub.s32 128, 128
          %323 = vsyncadd %s316, %s322
          %s324 = smul.addr %s36, 2
          %s325 = sadd.s32 %s320, %s324
          %s326 = smul.addr %s325, 64
          %s327 = scalar_lea.hbm %s0, %s326
          %s329 = sshll.u32 %s319, 4
          %s330 = int_to_ptr.vmem [resolvable:$true] %s329
          %332 = dma.hbm_to_vmem [thread:$0]  %s327, 128, %s330, %s316
        $region20: #{tpu_custom_call.1} parent=15 // pred_fallthru
          _
        // Predicated region
        $region21: #{tpu_custom_call.1} parent=15 // pred_check
          %p333 = pneg %p91
        $region22: #{tpu_custom_call.1} parent=15 // pred_check_branch
          %335 = sbr.rel (%p333) target = $region24
        $region23: #{tpu_custom_call.1} parent=15 // pred_region
          %s336 = sand.u32 %s29, 1
          %s337 = scalar_lea.sflag [#allocation6], %s336
          %s338 = sand.u32 %s81, 1
          %s339 = smul.addr %s338, 8
          %s340 = scalar_lea.vmem [#allocation5], %s339
          %s341 = smul.u32 2, %s37
          %s343 = ssub.s32 128, 128
          %344 = vsyncadd %s337, %s343
          %s345 = smul.addr %s36, 2
          %s346 = sadd.s32 %s341, %s345
          %s347 = smul.addr %s346, 64
          %s348 = scalar_lea.hbm %s1, %s347
          %s350 = sshll.u32 %s340, 4
          %s351 = int_to_ptr.vmem [resolvable:$true] %s350
          %353 = dma.hbm_to_vmem [thread:$0]  %s348, 128, %s351, %s337
        $region24: #{tpu_custom_call.1} parent=15 // pred_fallthru
          _
        // Predicated region
        $region25: #{tpu_custom_call.1} parent=15 // pred_check
          %p354 = pneg %p119
        $region26: #{tpu_custom_call.1} parent=15 // pred_check_branch
          %356 = sbr.rel (%p354) target = $region28
        $region27: #{tpu_custom_call.1} parent=15 // pred_region
          %s357 = sand.u32 %s29, 1
          %s358 = scalar_lea.sflag [#allocation6], %s357
          %s359 = sand.u32 %s109, 1
          %s360 = smul.addr %s359, 8
          %s361 = scalar_lea.vmem [#allocation7], %s360
          %s362 = smul.u32 2, %s37
          %s364 = ssub.s32 128, 128
          %365 = vsyncadd %s358, %s364
          %s366 = smul.addr %s36, 2
          %s367 = sadd.s32 %s362, %s366
          %s368 = smul.addr %s367, 64
          %s369 = scalar_lea.hbm %s2, %s368
          %s371 = sshll.u32 %s361, 4
          %s372 = int_to_ptr.vmem [resolvable:$true] %s371
          %374 = dma.hbm_to_vmem [thread:$0]  %s369, 128, %s372, %s358
        $region28: #{tpu_custom_call.1} parent=15 // pred_fallthru
          _
        // Predicated region
        $region29: #{tpu_custom_call.1} parent=15 // pred_check
          %p375 = pneg %p147
        $region30: #{tpu_custom_call.1} parent=15 // pred_check_branch
          %377 = sbr.rel (%p375) target = $region32
        $region31: #{tpu_custom_call.1} parent=15 // pred_region
          %s378 = sand.u32 %s29, 1
          %s379 = scalar_lea.sflag [#allocation9], %s378
          %s380 = sand.u32 %s137, 1
          %s381 = smul.addr %s380, 8
          %s382 = scalar_lea.vmem [#allocation8], %s381
          %s383 = smul.u32 2, %s37
          %s385 = ssub.s32 128, 128
          %386 = vsyncadd %s379, %s385
          %s387 = smul.addr %s36, 2
          %s388 = sadd.s32 %s383, %s387
          %s389 = smul.addr %s388, 64
          %s390 = scalar_lea.hbm %s3, %s389
          %s392 = sshll.u32 %s382, 4
          %s393 = int_to_ptr.vmem [resolvable:$true] %s392
          %395 = dma.hbm_to_vmem [thread:$0]  %s390, 128, %s393, %s379
        $region32: #{tpu_custom_call.1} parent=15 // pred_fallthru
          _
        // Predicated region
        $region33: #{tpu_custom_call.1} parent=15 // pred_check
          %p396 = pneg %p175
        $region34: #{tpu_custom_call.1} parent=15 // pred_check_branch
          %398 = sbr.rel (%p396) target = $region36
        $region35: #{tpu_custom_call.1} parent=15 // pred_region
          %s399 = sand.u32 %s29, 1
          %s400 = scalar_lea.sflag [#allocation9], %s399
          %s401 = sand.u32 %s165, 1
          %s402 = smul.addr %s401, 8
          %s403 = scalar_lea.vmem [#allocation10], %s402
          %s404 = smul.u32 2, %s37
          %s406 = ssub.s32 128, 128
          %407 = vsyncadd %s400, %s406
          %s408 = smul.addr %s36, 2
          %s409 = sadd.s32 %s404, %s408
          %s410 = smul.addr %s409, 64
          %s411 = scalar_lea.hbm %s4, %s410
          %s413 = sshll.u32 %s403, 4
          %s414 = int_to_ptr.vmem [resolvable:$true] %s413
          %416 = dma.hbm_to_vmem [thread:$0]  %s411, 128, %s414, %s400
        $region36: #{tpu_custom_call.1} parent=15 // pred_fallthru
          _
        // Predicated region
        $region37: #{tpu_custom_call.1} parent=15 // pred_check
          %p417 = pneg %p203
        $region38: #{tpu_custom_call.1} parent=15 // pred_check_branch
          %419 = sbr.rel (%p417) target = $region40
        $region39: #{tpu_custom_call.1} parent=15 // pred_region
          %s420 = smul.u32 2, %s37
          %p421 = scmp.lt.s32.totalorder %s36, 1
          %s422 = scalar_select %p421, %s36, 1
          %p423 = scmp.lt.s32.totalorder %s420, 1
          %s424 = scalar_select %p423, %s420, 1
          %s425 = smul.addr %s422, 2
          %s426 = sadd.s32 %s424, %s425
          %s427 = smul.addr %s426, 4
          %s428 = scalar_lea.vmem %s5, %s427
          %s429 = smul.u32 2, %s37
        $region40: #{tpu_custom_call.1} parent=15 // pred_fallthru
          _
        // Predicated region
        $region41: #{tpu_custom_call.1} parent=15 // pred_check
          %p430 = pneg %p231
        $region42: #{tpu_custom_call.1} parent=15 // pred_check_branch
          %432 = sbr.rel (%p430) target = $region44
        $region43: #{tpu_custom_call.1} parent=15 // pred_region
          %s433 = sand.u32 %s29, 1
          %s434 = scalar_lea.sflag [#allocation12], %s433
          %s435 = sand.u32 %s221, 1
          %s436 = smul.addr %s435, 8
          %s437 = scalar_lea.vmem [#allocation11], %s436
          %s438 = smul.u32 2, %s37
          %s440 = ssub.s32 128, 128
          %441 = vsyncadd %s434, %s440
          %s442 = smul.addr %s36, 2
          %s443 = sadd.s32 %s438, %s442
          %s444 = smul.addr %s443, 64
          %s445 = scalar_lea.hbm %s6, %s444
          %s447 = sshll.u32 %s437, 4
          %s448 = int_to_ptr.vmem [resolvable:$true] %s447
          %450 = dma.hbm_to_vmem [thread:$0]  %s445, 128, %s448, %s434
        $region44: #{tpu_custom_call.1} parent=15 // pred_fallthru
          _
        // Predicated region
        $region45: #{tpu_custom_call.1} parent=15 // pred_check
          %p451 = pneg %p259
        $region46: #{tpu_custom_call.1} parent=15 // pred_check_branch
          %453 = sbr.rel (%p451) target = $region48
        $region47: #{tpu_custom_call.1} parent=15 // pred_region
          %s454 = sand.u32 %s29, 1
          %s455 = scalar_lea.sflag [#allocation12], %s454
          %s456 = sand.u32 %s249, 1
          %s457 = smul.addr %s456, 8
          %s458 = scalar_lea.vmem [#allocation13], %s457
          %s459 = smul.u32 2, %s37
          %s461 = ssub.s32 128, 128
          %462 = vsyncadd %s455, %s461
          %s463 = smul.addr %s36, 2
          %s464 = sadd.s32 %s459, %s463
          %s465 = smul.addr %s464, 64
          %s466 = scalar_lea.hbm %s7, %s465
          %s468 = sshll.u32 %s458, 4
          %s469 = int_to_ptr.vmem [resolvable:$true] %s468
          %471 = dma.hbm_to_vmem [thread:$0]  %s466, 128, %s469, %s455
        $region48: #{tpu_custom_call.1} parent=15 // pred_fallthru
          _
      $region16: #{tpu_custom_call.1} parent=5 // pred_fallthru
        _
      %p472 = scmp.le.s32.totalorder 1, %s29
      %p473 = scmp.lt.s32.totalorder %s29, 3
      %p474 = pnand %p472, %p473
      %p475 = pneg %p474
      // Predicated region
      $region49: #{tpu_custom_call.1} parent=5 // pred_check
        _
      $region50: #{tpu_custom_call.1} parent=5 // pred_check_branch
        %477 = sbr.rel (%p474) target = $region52
      $region51: #{tpu_custom_call.1} parent=5 // pred_region
        %s478 = ssub.s32 %s29, 1
        %s479 = sand.u32 %s56, 1
        %s480 = scalar_lea.sflag [#allocation3], %s479
        %s481 = sand.u32 %s56, 1
        %s482 = smul.addr %s481, 8
        %s483 = scalar_lea.vmem [#allocation2], %s482
        // Predicated region
        $region53: #{tpu_custom_call.1} parent=51 // pred_check
          %p484 = pneg %p69
        $region54: #{tpu_custom_call.1} parent=51 // pred_check_branch
          %486 = sbr.rel (%p484) target = $region56
        $region55: #{tpu_custom_call.1} parent=51 // pred_region
          %487 = dma.done %s480, 128
        $region56: #{tpu_custom_call.1} parent=51 // pred_fallthru
          _
        %s488 = sand.u32 %s34, 1
        %s489 = scalar_lea.sflag [#allocation6], %s488
        %s490 = sand.u32 %s84, 1
        %s491 = smul.addr %s490, 8
        %s492 = scalar_lea.vmem [#allocation5], %s491
        // Predicated region
        $region57: #{tpu_custom_call.1} parent=51 // pred_check
          %p493 = pneg %p97
        $region58: #{tpu_custom_call.1} parent=51 // pred_check_branch
          %495 = sbr.rel (%p493) target = $region60
        $region59: #{tpu_custom_call.1} parent=51 // pred_region
          %496 = dma.done %s489, 128
        $region60: #{tpu_custom_call.1} parent=51 // pred_fallthru
          _
        %s497 = sand.u32 %s34, 1
        %s498 = scalar_lea.sflag [#allocation6], %s497
        %s499 = sand.u32 %s112, 1
        %s500 = smul.addr %s499, 8
        %s501 = scalar_lea.vmem [#allocation7], %s500
        // Predicated region
        $region61: #{tpu_custom_call.1} parent=51 // pred_check
          %p502 = pneg %p125
        $region62: #{tpu_custom_call.1} parent=51 // pred_check_branch
          %504 = sbr.rel (%p502) target = $region64
        $region63: #{tpu_custom_call.1} parent=51 // pred_region
          %505 = dma.done %s498, 128
        $region64: #{tpu_custom_call.1} parent=51 // pred_fallthru
          _
        %s506 = sand.u32 %s34, 1
        %s507 = scalar_lea.sflag [#allocation9], %s506
        %s508 = sand.u32 %s140, 1
        %s509 = smul.addr %s508, 8
        %s510 = scalar_lea.vmem [#allocation8], %s509
        // Predicated region
        $region65: #{tpu_custom_call.1} parent=51 // pred_check
          %p511 = pneg %p153
        $region66: #{tpu_custom_call.1} parent=51 // pred_check_branch
          %513 = sbr.rel (%p511) target = $region68
        $region67: #{tpu_custom_call.1} parent=51 // pred_region
          %514 = dma.done %s507, 128
        $region68: #{tpu_custom_call.1} parent=51 // pred_fallthru
          _
        %s515 = sand.u32 %s34, 1
        %s516 = scalar_lea.sflag [#allocation9], %s515
        %s517 = sand.u32 %s168, 1
        %s518 = smul.addr %s517, 8
        %s519 = scalar_lea.vmem [#allocation10], %s518
        // Predicated region
        $region69: #{tpu_custom_call.1} parent=51 // pred_check
          %p520 = pneg %p181
        $region70: #{tpu_custom_call.1} parent=51 // pred_check_branch
          %522 = sbr.rel (%p520) target = $region72
        $region71: #{tpu_custom_call.1} parent=51 // pred_region
          %523 = dma.done %s516, 128
        $region72: #{tpu_custom_call.1} parent=51 // pred_fallthru
          _
        %s524 = sand.u32 %s34, 1
        %s525 = scalar_lea.sflag [#allocation12], %s524
        %s526 = sand.u32 %s224, 1
        %s527 = smul.addr %s526, 8
        %s528 = scalar_lea.vmem [#allocation11], %s527
        // Predicated region
        $region73: #{tpu_custom_call.1} parent=51 // pred_check
          %p529 = pneg %p237
        $region74: #{tpu_custom_call.1} parent=51 // pred_check_branch
          %531 = sbr.rel (%p529) target = $region76
        $region75: #{tpu_custom_call.1} parent=51 // pred_region
          %532 = dma.done %s525, 128
        $region76: #{tpu_custom_call.1} parent=51 // pred_fallthru
          _
        %s533 = sand.u32 %s34, 1
        %s534 = scalar_lea.sflag [#allocation12], %s533
        %s535 = sand.u32 %s252, 1
        %s536 = smul.addr %s535, 8
        %s537 = scalar_lea.vmem [#allocation13], %s536
        // Predicated region
        $region77: #{tpu_custom_call.1} parent=51 // pred_check
          %p538 = pneg %p265
        $region78: #{tpu_custom_call.1} parent=51 // pred_check_branch
          %540 = sbr.rel (%p538) target = $region80
        $region79: #{tpu_custom_call.1} parent=51 // pred_region
          %541 = dma.done %s534, 128
        $region80: #{tpu_custom_call.1} parent=51 // pred_fallthru
          _
        %s542 = sand.u32 %s56, 1
        %s543 = scalar_lea.sflag [#allocation3], %s542
        %s544 = sand.u32 %s56, 1
        %s545 = smul.addr %s544, 8
        %s546 = scalar_lea.vmem [#allocation2], %s545
        %p547 = pneg %p69
        %p548 = pneg %p66
        %s549 = sand.u32 %s34, 1
        %s550 = scalar_lea.sflag [#allocation6], %s549
        %s551 = sand.u32 %s84, 1
        %s552 = smul.addr %s551, 8
        %s553 = scalar_lea.vmem [#allocation5], %s552
        %p554 = pneg %p97
        %p555 = pneg %p94
        %s556 = sand.u32 %s34, 1
        %s557 = scalar_lea.sflag [#allocation6], %s556
        %s558 = sand.u32 %s112, 1
        %s559 = smul.addr %s558, 8
        %s560 = scalar_lea.vmem [#allocation7], %s559
        %p561 = pneg %p125
        %p562 = pneg %p122
        %s563 = sand.u32 %s34, 1
        %s564 = scalar_lea.sflag [#allocation9], %s563
        %s565 = sand.u32 %s140, 1
        %s566 = smul.addr %s565, 8
        %s567 = scalar_lea.vmem [#allocation8], %s566
        %p568 = pneg %p153
        %p569 = pneg %p150
        %s570 = sand.u32 %s34, 1
        %s571 = scalar_lea.sflag [#allocation9], %s570
        %s572 = sand.u32 %s168, 1
        %s573 = smul.addr %s572, 8
        %s574 = scalar_lea.vmem [#allocation10], %s573
        %p575 = pneg %p181
        %p576 = pneg %p178
        %s577 = smul.u32 2, %s39
        %p578 = scmp.lt.s32.totalorder %s38, 1
        %s579 = scalar_select %p578, %s38, 1
        %p580 = scmp.lt.s32.totalorder %s577, 1
        %s581 = scalar_select %p580, %s577, 1
        %s582 = smul.addr %s579, 2
        %s583 = sadd.s32 %s581, %s582
        %s584 = smul.addr %s583, 4
        %s585 = scalar_lea.vmem %s5, %s584
        %p586 = pneg %p209
        %p587 = pneg %p206
        %s588 = sand.u32 %s34, 1
        %s589 = scalar_lea.sflag [#allocation12], %s588
        %s590 = sand.u32 %s224, 1
        %s591 = smul.addr %s590, 8
        %s592 = scalar_lea.vmem [#allocation11], %s591
        %p593 = pneg %p237
        %p594 = pneg %p234
        %s595 = sand.u32 %s34, 1
        %s596 = scalar_lea.sflag [#allocation12], %s595
        %s597 = sand.u32 %s252, 1
        %s598 = smul.addr %s597, 8
        %s599 = scalar_lea.vmem [#allocation13], %s598
        %p600 = pneg %p265
        %p601 = pneg %p262
        %p602 = pneg %p293
        %p603 = pneg %p290
        %s604 = sand.u32 %s280, 1
        %s605 = scalar_lea.sflag [#allocation4], %s604
        %s606 = sand.u32 %s280, 1
        %s607 = smul.addr %s606, 8
        %s608 = scalar_lea.vmem [#allocation14], %s607
        %s609 = smul.u32 2, %s39
        %s610 = smul.u32 2, %s39
        %s611 = smul.u32 2, %s39
        %s612 = smul.u32 2, %s39
        %s613 = smul.u32 2, %s39
        %s614 = smul.u32 2, %s39
        %p615 = scmp.lt.s32.totalorder %s38, 1
        %s616 = scalar_select %p615, %s38, 1
        %p617 = scmp.lt.s32.totalorder %s614, 1
        %s618 = scalar_select %p617, %s614, 1
        %s619 = smul.addr %s616, 2
        %s620 = sadd.s32 %s618, %s619
        %s621 = smul.addr %s620, 4
        %s622 = scalar_lea.vmem %s5, %s621
        %s623 = smul.u32 2, %s39
        %s624 = smul.u32 2, %s39
        %s625 = smul.u32 2, %s39
        %s626 = smul.u32 2, %s39
        %v627 = vld [vmem:[%s510] sm:$0xff]
        %v628 = vmul.f32 %v627, %v627
        %v630 = vcombine.high %v628, %v628
        %vm632 = vcmask 1043456
        %v633 = vsel %vm632, %v628, 0.0
        %v634 = vrot.slane %v633, 4
        %v635 = vadd.f32 %v633, %v634
        %v636 = vrot.slane %v635, 2
        %v637 = vadd.f32 %v635, %v636
        %v638 = vrot.slane %v637, 1
        %v639 = vadd.f32 %v637, %v638
        %v640 = vsel %vm632, %v630, 0.0
        %v641 = vrot.slane %v640, 4
        %v642 = vadd.f32 %v640, %v641
        %v643 = vrot.slane %v642, 2
        %v644 = vadd.f32 %v642, %v643
        %v645 = vrot.slane %v644, 1
        %v646 = vadd.f32 %v644, %v645
        %v647 = vmax.f32 %v639, 1e-24
        %v648 = vmax.f32 %v646, 1e-24
        %v649 = vrsqrt.pop %v647
        %v650 = vrsqrt.pop %v648
        %v651 = vld [vmem:[%s483] sm:$0xff]
        %v652 = vmul.f32 %v651, %v627
        %v654 = vcombine.high %v652, %v652
        %v656 = vsel %vm632, %v652, 0.0
        %v657 = vrot.slane %v656, 4
        %v658 = vadd.f32 %v656, %v657
        %v659 = vrot.slane %v658, 2
        %v660 = vadd.f32 %v658, %v659
        %v661 = vrot.slane %v660, 1
        %v662 = vadd.f32 %v660, %v661
        %v663 = vsel %vm632, %v654, 0.0
        %v664 = vrot.slane %v663, 4
        %v665 = vadd.f32 %v663, %v664
        %v666 = vrot.slane %v665, 2
        %v667 = vadd.f32 %v665, %v666
        %v668 = vrot.slane %v667, 1
        %v669 = vadd.f32 %v667, %v668
        %v670 = vmul.f32 %v651, %v651
        %v672 = vcombine.high %v670, %v670
        %v674 = vsel %vm632, %v670, 0.0
        %v675 = vrot.slane %v674, 4
        %v676 = vadd.f32 %v674, %v675
        %v677 = vrot.slane %v676, 2
        %v678 = vadd.f32 %v676, %v677
        %v679 = vrot.slane %v678, 1
        %v680 = vadd.f32 %v678, %v679
        %v681 = vsel %vm632, %v672, 0.0
        %v682 = vrot.slane %v681, 4
        %v683 = vadd.f32 %v681, %v682
        %v684 = vrot.slane %v683, 2
        %v685 = vadd.f32 %v683, %v684
        %v686 = vrot.slane %v685, 1
        %v687 = vadd.f32 %v685, %v686
        %v688 = vmax.f32 %v680, 1e-24
        %v689 = vmax.f32 %v687, 1e-24
        %v690 = vrsqrt.pop %v688
        %v691 = vrsqrt.pop %v689
        %v692 = vmul.f32 %v662, %v690
        %v693 = vmul.f32 %v669, %v691
        %v694 = vmul.f32 %v692, %v649
        %v695 = vmul.f32 %v693, %v650
        %v696 = vmul.f32 %v694, 1.442695
        %v697 = vpow.pop %v696
        %v698 = vmul.f32 %v695, 1.442695
        %v699 = vpow.pop %v698
        %v700 = vld [vmem:[%s492] sm:$0xff]
        %v701 = vmul.f32 %v700, %v627
        %v703 = vcombine.high %v701, %v701
        %v705 = vsel %vm632, %v701, 0.0
        %v706 = vrot.slane %v705, 4
        %v707 = vadd.f32 %v705, %v706
        %v708 = vrot.slane %v707, 2
        %v709 = vadd.f32 %v707, %v708
        %v710 = vrot.slane %v709, 1
        %v711 = vadd.f32 %v709, %v710
        %v712 = vsel %vm632, %v703, 0.0
        %v713 = vrot.slane %v712, 4
        %v714 = vadd.f32 %v712, %v713
        %v715 = vrot.slane %v714, 2
        %v716 = vadd.f32 %v714, %v715
        %v717 = vrot.slane %v716, 1
        %v718 = vadd.f32 %v716, %v717
        %v719 = vmul.f32 %v700, %v700
        %v721 = vcombine.high %v719, %v719
        %v723 = vsel %vm632, %v719, 0.0
        %v724 = vrot.slane %v723, 4
        %v725 = vadd.f32 %v723, %v724
        %v726 = vrot.slane %v725, 2
        %v727 = vadd.f32 %v725, %v726
        %v728 = vrot.slane %v727, 1
        %v729 = vadd.f32 %v727, %v728
        %v730 = vsel %vm632, %v721, 0.0
        %v731 = vrot.slane %v730, 4
        %v732 = vadd.f32 %v730, %v731
        %v733 = vrot.slane %v732, 2
        %v734 = vadd.f32 %v732, %v733
        %v735 = vrot.slane %v734, 1
        %v736 = vadd.f32 %v734, %v735
        %v737 = vmax.f32 %v729, 1e-24
        %v738 = vmax.f32 %v736, 1e-24
        %v739 = vrsqrt.pop %v737
        %v740 = vrsqrt.pop %v738
        %v741 = vmul.f32 %v711, %v739
        %v742 = vmul.f32 %v718, %v740
        %v743 = vmul.f32 %v741, %v649
        %v744 = vmul.f32 %v742, %v650
        %v745 = vmul.f32 %v743, 1.442695
        %v746 = vpow.pop %v745
        %v747 = vmul.f32 %v744, 1.442695
        %v748 = vpow.pop %v747
        %v749 = vadd.f32 %v697, %v746
        %v750 = vadd.f32 %v699, %v748
        %v751 = vld [vmem:[%s501] sm:$0xff]
        %v752 = vmul.f32 %v751, %v627
        %v754 = vcombine.high %v752, %v752
        %v756 = vsel %vm632, %v752, 0.0
        %v757 = vrot.slane %v756, 4
        %v758 = vadd.f32 %v756, %v757
        %v759 = vrot.slane %v758, 2
        %v760 = vadd.f32 %v758, %v759
        %v761 = vrot.slane %v760, 1
        %v762 = vadd.f32 %v760, %v761
        %v763 = vsel %vm632, %v754, 0.0
        %v764 = vrot.slane %v763, 4
        %v765 = vadd.f32 %v763, %v764
        %v766 = vrot.slane %v765, 2
        %v767 = vadd.f32 %v765, %v766
        %v768 = vrot.slane %v767, 1
        %v769 = vadd.f32 %v767, %v768
        %v770 = vmul.f32 %v751, %v751
        %v772 = vcombine.high %v770, %v770
        %v774 = vsel %vm632, %v770, 0.0
        %v775 = vrot.slane %v774, 4
        %v776 = vadd.f32 %v774, %v775
        %v777 = vrot.slane %v776, 2
        %v778 = vadd.f32 %v776, %v777
        %v779 = vrot.slane %v778, 1
        %v780 = vadd.f32 %v778, %v779
        %v781 = vsel %vm632, %v772, 0.0
        %v782 = vrot.slane %v781, 4
        %v783 = vadd.f32 %v781, %v782
        %v784 = vrot.slane %v783, 2
        %v785 = vadd.f32 %v783, %v784
        %v786 = vrot.slane %v785, 1
        %v787 = vadd.f32 %v785, %v786
        %v788 = vmax.f32 %v780, 1e-24
        %v789 = vmax.f32 %v787, 1e-24
        %v790 = vrsqrt.pop %v788
        %v791 = vrsqrt.pop %v789
        %v792 = vmul.f32 %v762, %v790
        %v793 = vmul.f32 %v769, %v791
        %v794 = vmul.f32 %v792, %v649
        %v795 = vmul.f32 %v793, %v650
        %v796 = vmul.f32 %v794, 1.442695
        %v797 = vpow.pop %v796
        %v798 = vmul.f32 %v795, 1.442695
        %v799 = vpow.pop %v798
        %v800 = vadd.f32 %v749, %v797
        %v801 = vadd.f32 %v750, %v799
        %v802 = vmul.f32 %v639, %v649
        %v803 = vmul.f32 %v646, %v650
        %v804 = vmul.f32 %v802, %v649
        %v805 = vmul.f32 %v803, %v650
        %v806 = vmul.f32 %v804, 1.442695
        %v807 = vpow.pop %v806
        %v808 = vmul.f32 %v805, 1.442695
        %v809 = vpow.pop %v808
        %v810 = vadd.f32 %v800, %v807
        %v811 = vadd.f32 %v801, %v809
        %v812 = vld [vmem:[%s519] sm:$0xff]
        %v813 = vmul.f32 %v812, %v627
        %v815 = vcombine.high %v813, %v813
        %v817 = vsel %vm632, %v813, 0.0
        %v818 = vrot.slane %v817, 4
        %v819 = vadd.f32 %v817, %v818
        %v820 = vrot.slane %v819, 2
        %v821 = vadd.f32 %v819, %v820
        %v822 = vrot.slane %v821, 1
        %v823 = vadd.f32 %v821, %v822
        %v824 = vsel %vm632, %v815, 0.0
        %v825 = vrot.slane %v824, 4
        %v826 = vadd.f32 %v824, %v825
        %v827 = vrot.slane %v826, 2
        %v828 = vadd.f32 %v826, %v827
        %v829 = vrot.slane %v828, 1
        %v830 = vadd.f32 %v828, %v829
        %v831 = vmul.f32 %v812, %v812
        %v833 = vcombine.high %v831, %v831
        %v835 = vsel %vm632, %v831, 0.0
        %v836 = vrot.slane %v835, 4
        %v837 = vadd.f32 %v835, %v836
        %v838 = vrot.slane %v837, 2
        %v839 = vadd.f32 %v837, %v838
        %v840 = vrot.slane %v839, 1
        %v841 = vadd.f32 %v839, %v840
        %v842 = vsel %vm632, %v833, 0.0
        %v843 = vrot.slane %v842, 4
        %v844 = vadd.f32 %v842, %v843
        %v845 = vrot.slane %v844, 2
        %v846 = vadd.f32 %v844, %v845
        %v847 = vrot.slane %v846, 1
        %v848 = vadd.f32 %v846, %v847
        %v849 = vmax.f32 %v841, 1e-24
        %v850 = vmax.f32 %v848, 1e-24
        %v851 = vrsqrt.pop %v849
        %v852 = vrsqrt.pop %v850
        %v853 = vmul.f32 %v823, %v851
        %v854 = vmul.f32 %v830, %v852
        %v855 = vmul.f32 %v853, %v649
        %v856 = vmul.f32 %v854, %v650
        %v857 = vmul.f32 %v855, 1.442695
        %v858 = vpow.pop %v857
        %v859 = vmul.f32 %v856, 1.442695
        %v860 = vpow.pop %v859
        %v861 = vadd.f32 %v810, %v858
        %v862 = vadd.f32 %v811, %v860
        %v863 = vld [vmem:[%s622] sm:$0xff]
        %v864 = vmul.f32 %v863, %v627
        %v866 = vcombine.high %v864, %v864
        %v868 = vsel %vm632, %v864, 0.0
        %v869 = vrot.slane %v868, 4
        %v870 = vadd.f32 %v868, %v869
        %v871 = vrot.slane %v870, 2
        %v872 = vadd.f32 %v870, %v871
        %v873 = vrot.slane %v872, 1
        %v874 = vadd.f32 %v872, %v873
        %v875 = vsel %vm632, %v866, 0.0
        %v876 = vrot.slane %v875, 4
        %v877 = vadd.f32 %v875, %v876
        %v878 = vrot.slane %v877, 2
        %v879 = vadd.f32 %v877, %v878
        %v880 = vrot.slane %v879, 1
        %v881 = vadd.f32 %v879, %v880
        %v882 = vmul.f32 %v863, %v863
        %v884 = vcombine.high %v882, %v882
        %v886 = vsel %vm632, %v882, 0.0
        %v887 = vrot.slane %v886, 4
        %v888 = vadd.f32 %v886, %v887
        %v889 = vrot.slane %v888, 2
        %v890 = vadd.f32 %v888, %v889
        %v891 = vrot.slane %v890, 1
        %v892 = vadd.f32 %v890, %v891
        %v893 = vsel %vm632, %v884, 0.0
        %v894 = vrot.slane %v893, 4
        %v895 = vadd.f32 %v893, %v894
        %v896 = vrot.slane %v895, 2
        %v897 = vadd.f32 %v895, %v896
        %v898 = vrot.slane %v897, 1
        %v899 = vadd.f32 %v897, %v898
        %v900 = vmax.f32 %v892, 1e-24
        %v901 = vmax.f32 %v899, 1e-24
        %v902 = vrsqrt.pop %v900
        %v903 = vrsqrt.pop %v901
        %v904 = vmul.f32 %v874, %v902
        %v905 = vmul.f32 %v881, %v903
        %v906 = vmul.f32 %v904, %v649
        %v907 = vmul.f32 %v905, %v650
        %v908 = vmul.f32 %v906, 1.442695
        %v909 = vpow.pop %v908
        %v910 = vmul.f32 %v907, 1.442695
        %v911 = vpow.pop %v910
        %v912 = vadd.f32 %v861, %v909
        %v913 = vadd.f32 %v862, %v911
        %v914 = vld [vmem:[%s528] sm:$0xff]
        %v915 = vmul.f32 %v914, %v627
        %v917 = vcombine.high %v915, %v915
        %v919 = vsel %vm632, %v915, 0.0
        %v920 = vrot.slane %v919, 4
        %v921 = vadd.f32 %v919, %v920
        %v922 = vrot.slane %v921, 2
        %v923 = vadd.f32 %v921, %v922
        %v924 = vrot.slane %v923, 1
        %v925 = vadd.f32 %v923, %v924
        %v926 = vsel %vm632, %v917, 0.0
        %v927 = vrot.slane %v926, 4
        %v928 = vadd.f32 %v926, %v927
        %v929 = vrot.slane %v928, 2
        %v930 = vadd.f32 %v928, %v929
        %v931 = vrot.slane %v930, 1
        %v932 = vadd.f32 %v930, %v931
        %v933 = vmul.f32 %v914, %v914
        %v935 = vcombine.high %v933, %v933
        %v937 = vsel %vm632, %v933, 0.0
        %v938 = vrot.slane %v937, 4
        %v939 = vadd.f32 %v937, %v938
        %v940 = vrot.slane %v939, 2
        %v941 = vadd.f32 %v939, %v940
        %v942 = vrot.slane %v941, 1
        %v943 = vadd.f32 %v941, %v942
        %v944 = vsel %vm632, %v935, 0.0
        %v945 = vrot.slane %v944, 4
        %v946 = vadd.f32 %v944, %v945
        %v947 = vrot.slane %v946, 2
        %v948 = vadd.f32 %v946, %v947
        %v949 = vrot.slane %v948, 1
        %v950 = vadd.f32 %v948, %v949
        %v951 = vmax.f32 %v943, 1e-24
        %v952 = vmax.f32 %v950, 1e-24
        %v953 = vrsqrt.pop %v951
        %v954 = vrsqrt.pop %v952
        %v955 = vmul.f32 %v925, %v953
        %v956 = vmul.f32 %v932, %v954
        %v957 = vmul.f32 %v955, %v649
        %v958 = vmul.f32 %v956, %v650
        %v959 = vmul.f32 %v957, 1.442695
        %v960 = vpow.pop %v959
        %v961 = vmul.f32 %v958, 1.442695
        %v962 = vpow.pop %v961
        %v963 = vadd.f32 %v912, %v960
        %v964 = vadd.f32 %v913, %v962
        %v965 = vld [vmem:[%s537] sm:$0xff]
        %v966 = vmul.f32 %v965, %v627
        %v968 = vcombine.high %v966, %v966
        %v970 = vsel %vm632, %v966, 0.0
        %v971 = vrot.slane %v970, 4
        %v972 = vadd.f32 %v970, %v971
        %v973 = vrot.slane %v972, 2
        %v974 = vadd.f32 %v972, %v973
        %v975 = vrot.slane %v974, 1
        %v976 = vadd.f32 %v974, %v975
        %v977 = vsel %vm632, %v968, 0.0
        %v978 = vrot.slane %v977, 4
        %v979 = vadd.f32 %v977, %v978
        %v980 = vrot.slane %v979, 2
        %v981 = vadd.f32 %v979, %v980
        %v982 = vrot.slane %v981, 1
        %v983 = vadd.f32 %v981, %v982
        %v984 = vmul.f32 %v965, %v965
        %v986 = vcombine.high %v984, %v984
        %v988 = vsel %vm632, %v984, 0.0
        %v989 = vrot.slane %v988, 4
        %v990 = vadd.f32 %v988, %v989
        %v991 = vrot.slane %v990, 2
        %v992 = vadd.f32 %v990, %v991
        %v993 = vrot.slane %v992, 1
        %v994 = vadd.f32 %v992, %v993
        %v995 = vsel %vm632, %v986, 0.0
        %v996 = vrot.slane %v995, 4
        %v997 = vadd.f32 %v995, %v996
        %v998 = vrot.slane %v997, 2
        %v999 = vadd.f32 %v997, %v998
        %v1000 = vrot.slane %v999, 1
        %v1001 = vadd.f32 %v999, %v1000
        %v1002 = vmax.f32 %v994, 1e-24
        %v1003 = vmax.f32 %v1001, 1e-24
        %v1004 = vrsqrt.pop %v1002
        %v1005 = vrsqrt.pop %v1003
        %v1006 = vmul.f32 %v976, %v1004
        %v1007 = vmul.f32 %v983, %v1005
        %v1008 = vmul.f32 %v1006, %v649
        %v1009 = vmul.f32 %v1007, %v650
        %v1010 = vmul.f32 %v1008, 1.442695
        %v1011 = vpow.pop %v1010
        %v1012 = vmul.f32 %v1009, 1.442695
        %v1013 = vpow.pop %v1012
        %v1014 = vadd.f32 %v963, %v1011
        %v1015 = vadd.f32 %v964, %v1013
        %v1016 = vrcp.pop %v1014
        %v1017 = vrcp.pop %v1015
        %v1018 = vmul.f32 %v697, %v1016
        %v1019 = vmul.f32 %v699, %v1017
        %v1022 = vcombine.low %v1018, %v1019
        %v1024 = vmul.f32 %v651, %v1022
        %v1025 = vmul.f32 %v746, %v1016
        %v1026 = vmul.f32 %v748, %v1017
        %v1029 = vcombine.low %v1025, %v1026
        %v1031 = vmul.f32 %v700, %v1029
        %v1032 = vadd.f32 %v1024, %v1031
        %v1033 = vmul.f32 %v797, %v1016
        %v1034 = vmul.f32 %v799, %v1017
        %v1037 = vcombine.low %v1033, %v1034
        %v1039 = vmul.f32 %v751, %v1037
        %v1040 = vadd.f32 %v1032, %v1039
        %v1041 = vmul.f32 %v807, %v1016
        %v1042 = vmul.f32 %v809, %v1017
        %v1045 = vcombine.low %v1041, %v1042
        %v1047 = vmul.f32 %v627, %v1045
        %v1048 = vadd.f32 %v1040, %v1047
        %v1049 = vmul.f32 %v858, %v1016
        %v1050 = vmul.f32 %v860, %v1017
        %v1053 = vcombine.low %v1049, %v1050
        %v1055 = vmul.f32 %v812, %v1053
        %v1056 = vadd.f32 %v1048, %v1055
        %v1057 = vmul.f32 %v909, %v1016
        %v1058 = vmul.f32 %v911, %v1017
        %v1061 = vcombine.low %v1057, %v1058
        %v1063 = vmul.f32 %v863, %v1061
        %v1064 = vadd.f32 %v1056, %v1063
        %v1065 = vmul.f32 %v960, %v1016
        %v1066 = vmul.f32 %v962, %v1017
        %v1069 = vcombine.low %v1065, %v1066
        %v1071 = vmul.f32 %v914, %v1069
        %v1072 = vadd.f32 %v1064, %v1071
        %v1073 = vmul.f32 %v1011, %v1016
        %v1074 = vmul.f32 %v1013, %v1017
        %v1077 = vcombine.low %v1073, %v1074
        %v1079 = vmul.f32 %v965, %v1077
        %v1080 = vadd.f32 %v1072, %v1079
        %1081 = vst [vmem:[%s608] sm:$0xff] %v1080
        %s1082 = sand.u32 %s280, 1
        %s1083 = scalar_lea.sflag [#allocation4], %s1082
        %s1084 = sand.u32 %s280, 1
        %s1085 = smul.addr %s1084, 8
        %s1086 = scalar_lea.vmem [#allocation14], %s1085
        // Predicated region
        $region81: #{tpu_custom_call.1} parent=51 // pred_check
          %p1087 = pneg %p290
        $region82: #{tpu_custom_call.1} parent=51 // pred_check_branch
          %1089 = sbr.rel (%p1087) target = $region84
        $region83: #{tpu_custom_call.1} parent=51 // pred_region
          %s1090 = smul.u32 2, %s39
          %s1092 = ssub.s32 128, 128
          %1093 = vsyncadd %s1083, %s1092
          %s1094 = smul.addr %s38, 2
          %s1095 = sadd.s32 %s1090, %s1094
          %s1096 = smul.addr %s1095, 64
          %s1097 = scalar_lea.hbm %s8, %s1096
          %s1099 = sshll.u32 %s1086, 4
          %s1100 = int_to_ptr.vmem [resolvable:$true] %s1099
          %1102 = dma.vmem_to_hbm [thread:$0]  %s1100, 128, %s1097, %s1083
        $region84: #{tpu_custom_call.1} parent=51 // pred_fallthru
          _
      $region52: #{tpu_custom_call.1} parent=5 // pred_fallthru
        _
      %p1103 = scmp.le.s32.totalorder 2, %s29
      // Predicated region
      $region85: #{tpu_custom_call.1} parent=5 // pred_check
        %p1104 = pneg %p1103
      $region86: #{tpu_custom_call.1} parent=5 // pred_check_branch
        %1106 = sbr.rel (%p1104) target = $region88
      $region87: #{tpu_custom_call.1} parent=5 // pred_region
        %s1107 = ssub.s32 %s29, 2
        // Predicated region
        $region89: #{tpu_custom_call.1} parent=87 // pred_check
          %p1108 = pneg %p296
        $region90: #{tpu_custom_call.1} parent=87 // pred_check_branch
          %1110 = sbr.rel (%p1108) target = $region92
        $region91: #{tpu_custom_call.1} parent=87 // pred_region
          %s1111 = sand.u32 %s281, 1
          %s1112 = scalar_lea.sflag [#allocation4], %s1111
          %s1113 = sand.u32 %s281, 1
          %s1114 = smul.addr %s1113, 8
          %s1115 = scalar_lea.vmem [#allocation14], %s1114
          %1116 = dma.done %s1112, 128
        $region92: #{tpu_custom_call.1} parent=87 // pred_fallthru
          _
      $region88: #{tpu_custom_call.1} parent=5 // pred_fallthru
        _
    $region6: #{tpu_custom_call.1} parent=1 // loop_footer
      %s33 = sadd.s32 1, %s29
    $region7: #{tpu_custom_call.1} parent=1 // loop_footer_branch
      %28 = sbr.rel target = $region3
    $region8: #{tpu_custom_call.1} parent=1 // loop_exit
      _
    %1117 = vsyncpa [#allocation3], 1
    %s1118 = scalar_lea.sflag [#allocation3], 1
    %1119 = vsyncpa %s1118, 1
    %1120 = vsyncpa [#allocation6], 1
    %s1121 = scalar_lea.sflag [#allocation6], 1
    %1122 = vsyncpa %s1121, 1
    %1123 = vsyncpa [#allocation9], 1
    %s1124 = scalar_lea.sflag [#allocation9], 1
    %1125 = vsyncpa %s1124, 1
    %1126 = vsyncpa [#allocation12], 1
    %s1127 = scalar_lea.sflag [#allocation12], 1
    %1128 = vsyncpa %s1127, 1
    %1129 = vsyncpa [#allocation4], 1
    %s1130 = scalar_lea.sflag [#allocation4], 1
    %1131 = vsyncpa %s1130, 1

</llo_original>
